<compile_context>
chip_gen: v5e
topology: v5e:2x2
jax: 0.10.0
libtpu: 0.0.40
codegen_flags: <defaults>
</compile_context>

<pallas_src>
import jax
import jax.numpy as jnp
from jax import lax
from jax.experimental import pallas as pl
from jax.experimental.pallas import tpu as pltpu

_BN_EPS = 1e-3  # nn.BatchNorm2d(branch_channels, 0.001)
_LANE = 128


def _round_up(v, m):
    return ((v + m - 1) // m) * m


# ----------------------------------------------------------------------------
# Fused Pallas kernel: conv-matmul (+bias, +PReLU) and max-pool branch
# ----------------------------------------------------------------------------
def _initial_block_kernel(pat_ref, w_ref, bias_ref, alpha_ref,
                          p0_ref, p1_ref, p2_ref, p3_ref,
                          conv_ref, pool_ref):
    # pat: (TM, Kp) bf16, w: (Kp, CP) bf16 (BN scale pre-folded), bias/alpha: (1, CP) f32
    acc = jnp.dot(pat_ref[...], w_ref[...], preferred_element_type=jnp.float32)
    y = acc + bias_ref[...]
    # per-channel PReLU: y if y >= 0 else alpha * y
    y = jnp.where(y >= 0.0, y, y * alpha_ref[...])
    conv_ref[...] = y.astype(conv_ref.dtype)
    # MaxPool2d(2, stride=2): elementwise max of the four strided taps (VPU)
    pool_ref[...] = jnp.maximum(jnp.maximum(p0_ref[...], p1_ref[...]),
                                jnp.maximum(p2_ref[...], p3_ref[...]))


def initial_block_forward(params, x):
    """x: (N, Cin, H, W) NCHW  ->  (N, Cb + Cin, H//2, W//2) NCHW."""
    w = params["conv_w"]            # (Cb, Cin, 3, 3) -- PyTorch Conv2d layout
    conv_b = params["conv_b"]       # (Cb,)
    gamma, beta, mean, var = params["bn"]
    alpha = params["prelu_alpha"]   # (Cb,)

    N, Cin, H, W = x.shape
    Cb, _, kh, kw = w.shape
    assert H % 2 == 0 and W % 2 == 0, "both branches must share spatial output size"
    stride, pad = 2, 1
    Ho = (H + 2 * pad - kh) // stride + 1   # == H // 2 for even H
    Wo = (W + 2 * pad - kw) // stride + 1   # == W // 2 for even W
    M = N * Ho * Wo
    K = kh * kw * Cin

    # single NCHW -> NHWC transpose at entry (channels-last is lane-friendly)
    x_nhwc = jnp.transpose(x, (0, 2, 3, 1))

    # --- im2col patch matrix for the conv branch (plain-JAX plumbing only) ---
    xp = jnp.pad(x_nhwc, ((0, 0), (pad, pad), (pad, pad), (0, 0)))
    taps = []
    for ih in range(kh):
        for iw in range(kw):
            taps.append(xp[:, ih: ih + stride * (Ho - 1) + 1: stride,
                              iw: iw + stride * (Wo - 1) + 1: stride, :])
    pat = jnp.concatenate(taps, axis=-1).reshape(M, K)     # rows ordered (n, ho, wo)

    # --- four strided taps for the 2x2 max-pool branch, same row ordering ---
    ptaps = [x_nhwc[:, di::2, dj::2, :].reshape(M, Cin)
             for di in range(2) for dj in range(2)]

    # --- fold BatchNorm (inference) into weight columns and bias ---
    scale = gamma / jnp.sqrt(var + _BN_EPS)
    w2 = jnp.transpose(w, (2, 3, 1, 0)).reshape(K, Cb) * scale[None, :]
    bias = (conv_b - mean) * scale + beta

    # --- lane-dense padding (K, Cout, Cin up to multiples of 128) ---
    Kp = _round_up(K, _LANE)
    CP = _round_up(Cb, _LANE)
    CPin = _round_up(Cin, _LANE)
    TM = min(512, _round_up(M, 8))
    Mpad = _round_up(M, TM)

    pat_p = jnp.pad(pat, ((0, Mpad - M), (0, Kp - K))).astype(jnp.bfloat16)
    w_p = jnp.pad(w2, ((0, Kp - K), (0, CP - Cb))).astype(jnp.bfloat16)
    bias_p = jnp.pad(bias, (0, CP - Cb)).reshape(1, CP).astype(jnp.float32)
    alpha_p = jnp.pad(alpha, (0, CP - Cb)).reshape(1, CP).astype(jnp.float32)
    ptaps_p = [jnp.pad(t, ((0, Mpad - M), (0, CPin - Cin))).astype(jnp.float32)
               for t in ptaps]

    grid = (Mpad // TM,)
    conv_out, pool_out = pl.pallas_call(
        _initial_block_kernel,
        out_shape=(jax.ShapeDtypeStruct((Mpad, CP), jnp.float32),
                   jax.ShapeDtypeStruct((Mpad, CPin), jnp.float32)),
        grid=grid,
        in_specs=[
            pl.BlockSpec((TM, Kp), lambda i: (i, 0)),     # patches
            pl.BlockSpec((Kp, CP), lambda i: (0, 0)),     # folded weights
            pl.BlockSpec((1, CP), lambda i: (0, 0)),      # folded bias
            pl.BlockSpec((1, CP), lambda i: (0, 0)),      # PReLU alpha
            pl.BlockSpec((TM, CPin), lambda i: (i, 0)),   # pool tap (0,0)
            pl.BlockSpec((TM, CPin), lambda i: (i, 0)),   # pool tap (0,1)
            pl.BlockSpec((TM, CPin), lambda i: (i, 0)),   # pool tap (1,0)
            pl.BlockSpec((TM, CPin), lambda i: (i, 0)),   # pool tap (1,1)
        ],
        out_specs=[
            pl.BlockSpec((TM, CP), lambda i: (i, 0)),     # conv branch (lane-dense)
            pl.BlockSpec((TM, CPin), lambda i: (i, 0)),   # pool branch (lane-dense)
        ],
        compiler_params=pltpu.CompilerParams(dimension_semantics=("parallel",)),
    )(pat_p, w_p, bias_p, alpha_p, *ptaps_p)

    # strip padding, concat along channels (NHWC), single NHWC -> NCHW transpose at exit
    conv_branch = conv_out[:M, :Cb].reshape(N, Ho, Wo, Cb)
    pool_branch = pool_out[:M, :Cin].reshape(N, Ho, Wo, Cin)
    y = jnp.concatenate([conv_branch, pool_branch], axis=-1)
    return jnp.transpose(y, (0, 3, 1, 2))


# ----------------------------------------------------------------------------
# Plain-JAX reference (inference-mode BN) for a correctness check
# ----------------------------------------------------------------------------
def reference_forward(params, x):
    w = params["conv_w"]
    b = params["conv_b"]
    gamma, beta, mean, var = params["bn"]
    alpha = params["prelu_alpha"]
    y = lax.conv_general_dilated(x, w, window_strides=(2, 2),
                                 padding=((1, 1), (1, 1)),
                                 dimension_numbers=("NCHW", "OIHW", "NCHW"))
    y = y + b[None, :, None, None]
    y = ((y - mean[None, :, None, None])
         / jnp.sqrt(var[None, :, None, None] + _BN_EPS)
         * gamma[None, :, None, None] + beta[None, :, None, None])
    y = jnp.where(y >= 0.0, y, alpha[None, :, None, None] * y)
    p = lax.reduce_window(x, -jnp.inf, lax.max,
                          window_dimensions=(1, 1, 2, 2),
                          window_strides=(1, 1, 2, 2), padding="VALID")
    return jnp.concatenate([y, p], axis=1)


# ----------------------------------------------------------------------------
if __name__ == "__main__":
    key = jax.random.PRNGKey(0)
    kx, kw, kb, kbn, ka = jax.random.split(key, 5)

    # small shapes consistent with the module
    N, Cin, H, W = 2, 4, 16, 16          # input_channels = 4
    Cb = 12                              # branch_channels = 12  -> 16 output channels

    x = jax.random.normal(kx, (N, Cin, H, W), jnp.float32)

    kbn1, kbn2, kbn3, kbn4 = jax.random.split(kbn, 4)
    params = dict(
        conv_w=0.1 * jax.random.normal(kw, (Cb, Cin, 3, 3), jnp.float32),
        conv_b=0.05 * jax.random.normal(kb, (Cb,), jnp.float32),
        bn=(1.0 + 0.1 * jax.random.normal(kbn1, (Cb,), jnp.float32),   # gamma
            0.1 * jax.random.normal(kbn2, (Cb,), jnp.float32),         # beta
            0.1 * jax.random.normal(kbn3, (Cb,), jnp.float32),         # running mean
            0.5 + jnp.abs(jax.random.normal(kbn4, (Cb,), jnp.float32))),  # running var
        prelu_alpha=0.25 + 0.05 * jax.random.normal(ka, (Cb,), jnp.float32),
    )

    y = initial_block_forward(params, x)
    y = jax.block_until_ready(y)

    expected = (N, Cb + Cin, H // 2, W // 2)
    assert y.shape == expected, (y.shape, expected)
    assert bool(jnp.all(jnp.isfinite(y)))

    # loose tolerance: kernel matmul runs with bf16 inputs (f32 accumulation)
    y_ref = reference_forward(params, x)
    max_err = float(jnp.max(jnp.abs(y - y_ref)))
    assert bool(jnp.allclose(y, y_ref, atol=3e-2, rtol=3e-2)), max_err

    print("KERNEL_OK")
</pallas_src>

<mosaic_0001>
module attributes {stable_mosaic.version = 11 : i64} {
  func.func @_initial_block_kernel(%arg0: i32, %arg1: memref<128x128xbf16, #tpu.memory_space<vmem>>, %arg2: memref<128x128xbf16, #tpu.memory_space<vmem>>, %arg3: memref<1x128xf32, #tpu.memory_space<vmem>>, %arg4: memref<1x128xf32, #tpu.memory_space<vmem>>, %arg5: memref<128x128xf32, #tpu.memory_space<vmem>>, %arg6: memref<128x128xf32, #tpu.memory_space<vmem>>, %arg7: memref<128x128xf32, #tpu.memory_space<vmem>>, %arg8: memref<128x128xf32, #tpu.memory_space<vmem>>, %arg9: memref<128x128xf32, #tpu.memory_space<vmem>>, %arg10: memref<128x128xf32, #tpu.memory_space<vmem>>) attributes {dimension_semantics = [#tpu.dimension_semantics<parallel>], iteration_bounds = array<i64: 1>, scalar_prefetch = 0 : i64, scratch_operands = 0 : i64, tpu.core_type = #tpu.core_type<tc>, window_params = [{transform_indices = @transform_0, window_bounds = array<i64: 128, 128>}, {pipeline_mode = #tpu.pipeline_mode<synchronous>, transform_indices = @transform_1, window_bounds = array<i64: 128, 128>}, {pipeline_mode = #tpu.pipeline_mode<synchronous>, transform_indices = @transform_2, window_bounds = array<i64: 1, 128>}, {pipeline_mode = #tpu.pipeline_mode<synchronous>, transform_indices = @transform_3, window_bounds = array<i64: 1, 128>}, {transform_indices = @transform_4, window_bounds = array<i64: 128, 128>}, {transform_indices = @transform_5, window_bounds = array<i64: 128, 128>}, {transform_indices = @transform_6, window_bounds = array<i64: 128, 128>}, {transform_indices = @transform_7, window_bounds = array<i64: 128, 128>}, {transform_indices = @transform_8, window_bounds = array<i64: 128, 128>}, {transform_indices = @transform_9, window_bounds = array<i64: 128, 128>}]} {
    %c0 = arith.constant 0 : index
    %c0_0 = arith.constant 0 : index
    %0 = vector.load %arg1[%c0, %c0_0] : memref<128x128xbf16, #tpu.memory_space<vmem>>, vector<128x128xbf16>
    %c0_1 = arith.constant 0 : index
    %c0_2 = arith.constant 0 : index
    %1 = vector.load %arg2[%c0_1, %c0_2] : memref<128x128xbf16, #tpu.memory_space<vmem>>, vector<128x128xbf16>
    %cst = arith.constant dense<0.000000e+00> : vector<128x128xf32>
    %2 = tpu.matmul %0, %1, %cst {dimension_numbers = #tpu.dot_dimension_numbers<[1], [0], [0], [1], [0, 0, 1, 1], [], []>} : vector<128x128xbf16>, vector<128x128xbf16>, vector<128x128xf32> -> vector<128x128xf32>
    %c0_3 = arith.constant 0 : index
    %c0_4 = arith.constant 0 : index
    %3 = vector.load %arg3[%c0_3, %c0_4] : memref<1x128xf32, #tpu.memory_space<vmem>>, vector<1x128xf32>
    %4 = vector.broadcast %3 : vector<1x128xf32> to vector<128x128xf32>
    %5 = arith.addf %2, %4 : vector<128x128xf32>
    %cst_5 = arith.constant 0.000000e+00 : f32
    %6 = vector.broadcast %cst_5 : f32 to vector<128x128xf32>
    %7 = arith.cmpf oge, %5, %6 : vector<128x128xf32>
    %c0_6 = arith.constant 0 : index
    %c0_7 = arith.constant 0 : index
    %8 = vector.load %arg4[%c0_6, %c0_7] : memref<1x128xf32, #tpu.memory_space<vmem>>, vector<1x128xf32>
    %9 = vector.broadcast %8 : vector<1x128xf32> to vector<128x128xf32>
    %10 = arith.mulf %5, %9 : vector<128x128xf32>
    %11 = arith.select %7, %5, %10 : vector<128x128xi1>, vector<128x128xf32>
    %c0_8 = arith.constant 0 : index
    %c0_9 = arith.constant 0 : index
    %12 = vector.load %arg9[%c0_8, %c0_9] : memref<128x128xf32, #tpu.memory_space<vmem>>, vector<128x128xf32>
    tpu.vector_store %arg9[%c0_8, %c0_9], %11 {strides = array<i32>} : memref<128x128xf32, #tpu.memory_space<vmem>>, vector<128x128xf32>,
    %c0_10 = arith.constant 0 : index
    %c0_11 = arith.constant 0 : index
    %13 = vector.load %arg5[%c0_10, %c0_11] : memref<128x128xf32, #tpu.memory_space<vmem>>, vector<128x128xf32>
    %c0_12 = arith.constant 0 : index
    %c0_13 = arith.constant 0 : index
    %14 = vector.load %arg6[%c0_12, %c0_13] : memref<128x128xf32, #tpu.memory_space<vmem>>, vector<128x128xf32>
    %15 = arith.maximumf %13, %14 : vector<128x128xf32>
    %c0_14 = arith.constant 0 : index
    %c0_15 = arith.constant 0 : index
    %16 = vector.load %arg7[%c0_14, %c0_15] : memref<128x128xf32, #tpu.memory_space<vmem>>, vector<128x128xf32>
    %c0_16 = arith.constant 0 : index
    %c0_17 = arith.constant 0 : index
    %17 = vector.load %arg8[%c0_16, %c0_17] : memref<128x128xf32, #tpu.memory_space<vmem>>, vector<128x128xf32>
    %18 = arith.maximumf %16, %17 : vector<128x128xf32>
    %19 = arith.maximumf %15, %18 : vector<128x128xf32>
    %c0_18 = arith.constant 0 : index
    %c0_19 = arith.constant 0 : index
    %20 = vector.load %arg10[%c0_18, %c0_19] : memref<128x128xf32, #tpu.memory_space<vmem>>, vector<128x128xf32>
    tpu.vector_store %arg10[%c0_18, %c0_19], %19 {strides = array<i32>} : memref<128x128xf32, #tpu.memory_space<vmem>>, vector<128x128xf32>,
    return
  }
  func.func @transform_0(%arg0: i32) -> (i32, i32) {
    %c0_i32 = arith.constant 0 : i32
    %c0_i32_0 = arith.constant 0 : i32
    return %arg0, %c0_i32 : i32, i32
  }
  func.func @transform_1(%arg0: i32) -> (i32, i32) {
    %c0_i32 = arith.constant 0 : i32
    %c0_i32_0 = arith.constant 0 : i32
    %c0_i32_1 = arith.constant 0 : i32
    return %c0_i32, %c0_i32_0 : i32, i32
  }
  func.func @transform_2(%arg0: i32) -> (i32, i32) {
    %c0_i32 = arith.constant 0 : i32
    %c0_i32_0 = arith.constant 0 : i32
    %c0_i32_1 = arith.constant 0 : i32
    return %c0_i32, %c0_i32_0 : i32, i32
  }
  func.func @transform_3(%arg0: i32) -> (i32, i32) {
    %c0_i32 = arith.constant 0 : i32
    %c0_i32_0 = arith.constant 0 : i32
    %c0_i32_1 = arith.constant 0 : i32
    return %c0_i32, %c0_i32_0 : i32, i32
  }
  func.func @transform_4(%arg0: i32) -> (i32, i32) {
    %c0_i32 = arith.constant 0 : i32
    %c0_i32_0 = arith.constant 0 : i32
    return %arg0, %c0_i32 : i32, i32
  }
  func.func @transform_5(%arg0: i32) -> (i32, i32) {
    %c0_i32 = arith.constant 0 : i32
    %c0_i32_0 = arith.constant 0 : i32
    return %arg0, %c0_i32 : i32, i32
  }
  func.func @transform_6(%arg0: i32) -> (i32, i32) {
    %c0_i32 = arith.constant 0 : i32
    %c0_i32_0 = arith.constant 0 : i32
    return %arg0, %c0_i32 : i32, i32
  }
  func.func @transform_7(%arg0: i32) -> (i32, i32) {
    %c0_i32 = arith.constant 0 : i32
    %c0_i32_0 = arith.constant 0 : i32
    return %arg0, %c0_i32 : i32, i32
  }
  func.func @transform_8(%arg0: i32) -> (i32, i32) {
    %c0_i32 = arith.constant 0 : i32
    %c0_i32_0 = arith.constant 0 : i32
    return %arg0, %c0_i32 : i32, i32
  }
  func.func @transform_9(%arg0: i32) -> (i32, i32) {
    %c0_i32 = arith.constant 0 : i32
    %c0_i32_0 = arith.constant 0 : i32
    return %arg0, %c0_i32 : i32, i32
  }
}

</mosaic_0001>

<llo_original>
// kernel: tpu_custom_call.1
$region0: #{tpu_custom_call.1}
  #allocation0 [shape = 'u32[]', space=smem, size = 0x4, offset = 0x4, fixed_abs, tag = 'smem constant byte address 0x4 - core index']
  #allocation1 [shape = 'u32[72,128]{1,0:T(1,128)}', space=vmem, size = 0x9000, scoped, tag = 'internal scratch']
  %s0 = inlined_call_operand.hbm [shape: bf16[128,128], index: 0, kind: input, shape index: {}]
  %s1 = inlined_call_operand.hbm [shape: bf16[128,128], index: 1, kind: input, shape index: {}]
  %s2 = inlined_call_operand.vmem [shape: f32[1,128], index: 2, kind: input, shape index: {}]
  %s3 = inlined_call_operand.vmem [shape: f32[1,128], index: 3, kind: input, shape index: {}]
  %s4 = inlined_call_operand.hbm [shape: f32[128,128], index: 4, kind: input, shape index: {}]
  %s5 = inlined_call_operand.hbm [shape: f32[128,128], index: 5, kind: input, shape index: {}]
  %s6 = inlined_call_operand.hbm [shape: f32[128,128], index: 6, kind: input, shape index: {}]
  %s7 = inlined_call_operand.hbm [shape: f32[128,128], index: 7, kind: input, shape index: {}]
  %s8 = inlined_call_operand.hbm [shape: f32[128,128], index: 8, kind: output, shape index: {0}]
  %s9 = inlined_call_operand.hbm [shape: f32[128,128], index: 9, kind: output, shape index: {1}]
  %10 = xla_tuple %s8, %s9
  %s11 = sld [smem:[#allocation0]]
  $region74: #{tpu_custom_call.1} parent=0
    _
  %s13 = ssub.s32 1, %s11
  %s14 = scalar_select 0, %s13, %s11
  $region1: #{tpu_custom_call.1} parent=0
    #allocation2 [shape = 'u8[32768]{0}', space=vmem, size = 0x8000, scoped, tag = 'input window, operand 0, single buffered']
    #allocation3 [shape = 's32[1]{0}', space=sflag, size = 0x4, scoped, tag = 'scoped memory for tpu_custom_call.1']
    #allocation4 [shape = 's32[1]{0}', space=sflag, size = 0x4, scoped, tag = 'scoped memory for tpu_custom_call.1']
    #allocation5 [shape = 'u8[32768]{0}', space=vmem, size = 0x8000, scoped, tag = 'input window, operand 1, single buffered']
    #allocation6 [shape = 's32[1]{0}', space=sflag, size = 0x4, scoped, tag = 'scoped memory for tpu_custom_call.1']
    #allocation7 [shape = 'u8[65536]{0}', space=vmem, size = 0x10000, scoped, tag = 'input window, operand 4, single buffered']
    #allocation8 [shape = 'u8[65536]{0}', space=vmem, size = 0x10000, scoped, tag = 'input window, operand 5, single buffered']
    #allocation9 [shape = 's32[1]{0}', space=sflag, size = 0x4, scoped, tag = 'scoped memory for tpu_custom_call.1']
    #allocation10 [shape = 'u8[65536]{0}', space=vmem, size = 0x10000, scoped, tag = 'input window, operand 6, single buffered']
    #allocation11 [shape = 'u8[65536]{0}', space=vmem, size = 0x10000, scoped, tag = 'input window, operand 7, single buffered']
    #allocation12 [shape = 's32[1]{0}', space=sflag, size = 0x4, scoped, tag = 'scoped memory for tpu_custom_call.1']
    #allocation13 [shape = 'u8[65536]{0}', space=vmem, size = 0x10000, scoped, tag = 'output window, operand 0, single buffered']
    #allocation14 [shape = 'u8[65536]{0}', space=vmem, size = 0x10000, scoped, tag = 'output window, operand 1, single buffered']
    #allocation15 [shape = 's32[1]{0}', space=sflag, size = 0x4, scoped, tag = 'scoped memory for tpu_custom_call.1']
    %15 = vsyncpa [#allocation3], 0
    %16 = vsyncpa [#allocation6], 0
    %17 = vsyncpa [#allocation9], 0
    %18 = vsyncpa [#allocation12], 0
    %19 = vsyncpa [#allocation4], 0
    %20 = vsyncpa [#allocation15], 0
    // Predicated region
    $region2: #{tpu_custom_call.1} parent=1 // pred_check
      _
    $region3: #{tpu_custom_call.1} parent=1 // pred_check_branch
      %22 = sbr.rel (0) target = $region5
    $region4: #{tpu_custom_call.1} parent=1 // pred_region
      %24 = vsyncadd [#allocation3], 0
      %s25 = sshll.u32 %s0, 4
      %s26 = int_to_ptr.hbm [resolvable:$true] %s25
      %s27 = sshll.u32 [#allocation2], 4
      %s28 = int_to_ptr.vmem [resolvable:$true] %s27
      %33 = dma.hbm_to_vmem [thread:$0]  %s26, 1024, %s28, [#allocation3], 64, 64, 4
    $region5: #{tpu_custom_call.1} parent=1 // pred_fallthru
      _
    // Predicated region
    $region6: #{tpu_custom_call.1} parent=1 // pred_check
      _
    $region7: #{tpu_custom_call.1} parent=1 // pred_check_branch
      %35 = sbr.rel (0) target = $region9
    $region8: #{tpu_custom_call.1} parent=1 // pred_region
      %37 = vsyncadd [#allocation6], 0
      %s38 = sshll.u32 %s1, 4
      %s39 = int_to_ptr.hbm [resolvable:$true] %s38
      %s40 = sshll.u32 [#allocation5], 4
      %s41 = int_to_ptr.vmem [resolvable:$true] %s40
      %46 = dma.hbm_to_vmem [thread:$0]  %s39, 1024, %s41, [#allocation6], 64, 64, 4
    $region9: #{tpu_custom_call.1} parent=1 // pred_fallthru
      _
    // Predicated region
    $region10: #{tpu_custom_call.1} parent=1 // pred_check
      _
    $region11: #{tpu_custom_call.1} parent=1 // pred_check_branch
      %48 = sbr.rel (0) target = $region13
    $region12: #{tpu_custom_call.1} parent=1 // pred_region
      _
    $region13: #{tpu_custom_call.1} parent=1 // pred_fallthru
      _
    // Predicated region
    $region14: #{tpu_custom_call.1} parent=1 // pred_check
      _
    $region15: #{tpu_custom_call.1} parent=1 // pred_check_branch
      %50 = sbr.rel (0) target = $region17
    $region16: #{tpu_custom_call.1} parent=1 // pred_region
      _
    $region17: #{tpu_custom_call.1} parent=1 // pred_fallthru
      _
    // Predicated region
    $region18: #{tpu_custom_call.1} parent=1 // pred_check
      _
    $region19: #{tpu_custom_call.1} parent=1 // pred_check_branch
      %52 = sbr.rel (0) target = $region21
    $region20: #{tpu_custom_call.1} parent=1 // pred_region
      %54 = vsyncadd [#allocation6], 0
      %s55 = sshll.u32 %s4, 4
      %s56 = int_to_ptr.hbm [resolvable:$true] %s55
      %s57 = sshll.u32 [#allocation7], 4
      %s58 = int_to_ptr.vmem [resolvable:$true] %s57
      %63 = dma.hbm_to_vmem [thread:$0]  %s56, 2048, %s58, [#allocation6], 128, 128, 8
    $region21: #{tpu_custom_call.1} parent=1 // pred_fallthru
      _
    // Predicated region
    $region22: #{tpu_custom_call.1} parent=1 // pred_check
      _
    $region23: #{tpu_custom_call.1} parent=1 // pred_check_branch
      %65 = sbr.rel (0) target = $region25
    $region24: #{tpu_custom_call.1} parent=1 // pred_region
      %67 = vsyncadd [#allocation9], 0
      %s68 = sshll.u32 %s5, 4
      %s69 = int_to_ptr.hbm [resolvable:$true] %s68
      %s70 = sshll.u32 [#allocation8], 4
      %s71 = int_to_ptr.vmem [resolvable:$true] %s70
      %76 = dma.hbm_to_vmem [thread:$0]  %s69, 2048, %s71, [#allocation9], 128, 128, 8
    $region25: #{tpu_custom_call.1} parent=1 // pred_fallthru
      _
    // Predicated region
    $region26: #{tpu_custom_call.1} parent=1 // pred_check
      _
    $region27: #{tpu_custom_call.1} parent=1 // pred_check_branch
      %78 = sbr.rel (0) target = $region29
    $region28: #{tpu_custom_call.1} parent=1 // pred_region
      %80 = vsyncadd [#allocation9], 0
      %s81 = sshll.u32 %s6, 4
      %s82 = int_to_ptr.hbm [resolvable:$true] %s81
      %s83 = sshll.u32 [#allocation10], 4
      %s84 = int_to_ptr.vmem [resolvable:$true] %s83
      %89 = dma.hbm_to_vmem [thread:$0]  %s82, 2048, %s84, [#allocation9], 128, 128, 8
    $region29: #{tpu_custom_call.1} parent=1 // pred_fallthru
      _
    // Predicated region
    $region30: #{tpu_custom_call.1} parent=1 // pred_check
      _
    $region31: #{tpu_custom_call.1} parent=1 // pred_check_branch
      %91 = sbr.rel (0) target = $region33
    $region32: #{tpu_custom_call.1} parent=1 // pred_region
      %93 = vsyncadd [#allocation12], 0
      %s94 = sshll.u32 %s7, 4
      %s95 = int_to_ptr.hbm [resolvable:$true] %s94
      %s96 = sshll.u32 [#allocation11], 4
      %s97 = int_to_ptr.vmem [resolvable:$true] %s96
      %102 = dma.hbm_to_vmem [thread:$0]  %s95, 2048, %s97, [#allocation12], 128, 128, 8
    $region33: #{tpu_custom_call.1} parent=1 // pred_fallthru
      _
    // Predicated region
    $region34: #{tpu_custom_call.1} parent=1 // pred_check
      _
    $region35: #{tpu_custom_call.1} parent=1 // pred_check_branch
      %104 = sbr.rel (0) target = $region37
    $region36: #{tpu_custom_call.1} parent=1 // pred_region
      %106 = dma.done [#allocation3], 1024
    $region37: #{tpu_custom_call.1} parent=1 // pred_fallthru
      _
    // Predicated region
    $region38: #{tpu_custom_call.1} parent=1 // pred_check
      _
    $region39: #{tpu_custom_call.1} parent=1 // pred_check_branch
      %108 = sbr.rel (0) target = $region41
    $region40: #{tpu_custom_call.1} parent=1 // pred_region
      %110 = dma.done [#allocation6], 1024
    $region41: #{tpu_custom_call.1} parent=1 // pred_fallthru
      _
    // Predicated region
    $region42: #{tpu_custom_call.1} parent=1 // pred_check
      _
    $region43: #{tpu_custom_call.1} parent=1 // pred_check_branch
      %112 = sbr.rel (0) target = $region45
    $region44: #{tpu_custom_call.1} parent=1 // pred_region
      %114 = dma.done [#allocation6], 2048
    $region45: #{tpu_custom_call.1} parent=1 // pred_fallthru
      _
    // Predicated region
    $region46: #{tpu_custom_call.1} parent=1 // pred_check
      _
    $region47: #{tpu_custom_call.1} parent=1 // pred_check_branch
      %116 = sbr.rel (0) target = $region49
    $region48: #{tpu_custom_call.1} parent=1 // pred_region
      %118 = dma.done [#allocation9], 2048
    $region49: #{tpu_custom_call.1} parent=1 // pred_fallthru
      _
    // Predicated region
    $region50: #{tpu_custom_call.1} parent=1 // pred_check
      _
    $region51: #{tpu_custom_call.1} parent=1 // pred_check_branch
      %120 = sbr.rel (0) target = $region53
    $region52: #{tpu_custom_call.1} parent=1 // pred_region
      %122 = dma.done [#allocation9], 2048
    $region53: #{tpu_custom_call.1} parent=1 // pred_fallthru
      _
    // Predicated region
    $region54: #{tpu_custom_call.1} parent=1 // pred_check
      _
    $region55: #{tpu_custom_call.1} parent=1 // pred_check_branch
      %124 = sbr.rel (0) target = $region57
    $region56: #{tpu_custom_call.1} parent=1 // pred_region
      %126 = dma.done [#allocation12], 2048
    $region57: #{tpu_custom_call.1} parent=1 // pred_fallthru
      _
    %v127 = vld [vmem:[#allocation2] sm:$0xf]
    %v128 = vld [vmem:[#allocation2 + $0x4] sm:$0xf]
    %v129 = vld [vmem:[#allocation2 + $0x8] sm:$0xf]
    %v130 = vld [vmem:[#allocation2 + $0xc] sm:$0xf]
    %v131 = vld [vmem:[#allocation2 + $0x10] sm:$0xf]
    %v132 = vld [vmem:[#allocation2 + $0x14] sm:$0xf]
    %v133 = vld [vmem:[#allocation2 + $0x18] sm:$0xf]
    %v134 = vld [vmem:[#allocation2 + $0x1c] sm:$0xf]
    %v135 = vld [vmem:[#allocation2 + $0x20] sm:$0xf]
    %v136 = vld [vmem:[#allocation2 + $0x24] sm:$0xf]
    %v137 = vld [vmem:[#allocation2 + $0x28] sm:$0xf]
    %v138 = vld [vmem:[#allocation2 + $0x2c] sm:$0xf]
    %v139 = vld [vmem:[#allocation2 + $0x30] sm:$0xf]
    %v140 = vld [vmem:[#allocation2 + $0x34] sm:$0xf]
    %v141 = vld [vmem:[#allocation2 + $0x38] sm:$0xf]
    %v142 = vld [vmem:[#allocation2 + $0x3c] sm:$0xf]
    %v143 = vld [vmem:[#allocation5] sm:$0xf]
    %v144 = vld [vmem:[#allocation5 + $0x4] sm:$0xf]
    %v145 = vld [vmem:[#allocation5 + $0x8] sm:$0xf]
    %v146 = vld [vmem:[#allocation5 + $0xc] sm:$0xf]
    %v147 = vld [vmem:[#allocation5 + $0x10] sm:$0xf]
    %v148 = vld [vmem:[#allocation5 + $0x14] sm:$0xf]
    %v149 = vld [vmem:[#allocation5 + $0x18] sm:$0xf]
    %v150 = vld [vmem:[#allocation5 + $0x1c] sm:$0xf]
    %v151 = vld [vmem:[#allocation5 + $0x20] sm:$0xf]
    %v152 = vld [vmem:[#allocation5 + $0x24] sm:$0xf]
    %v153 = vld [vmem:[#allocation5 + $0x28] sm:$0xf]
    %v154 = vld [vmem:[#allocation5 + $0x2c] sm:$0xf]
    %v155 = vld [vmem:[#allocation5 + $0x30] sm:$0xf]
    %v156 = vld [vmem:[#allocation5 + $0x34] sm:$0xf]
    %v157 = vld [vmem:[#allocation5 + $0x38] sm:$0xf]
    %v158 = vld [vmem:[#allocation5 + $0x3c] sm:$0xf]
    %v159 = vld [vmem:[%s2] sm:$0x1]
    %v161 = vperm.slane %v159, 0
    %v179 = vunpack.c.l.b16 %v127
    %v180 = vunpack.c.l.b16 %v128
    %v181 = vunpack.c.l.b16 %v129
    %v182 = vunpack.c.l.b16 %v130
    %v183 = vunpack.c.l.b16 %v131
    %v184 = vunpack.c.l.b16 %v132
    %v185 = vunpack.c.l.b16 %v133
    %v186 = vunpack.c.l.b16 %v134
    %v187 = vunpack.c.l.b16 %v135
    %v188 = vunpack.c.l.b16 %v136
    %v189 = vunpack.c.l.b16 %v137
    %v190 = vunpack.c.l.b16 %v138
    %v191 = vunpack.c.l.b16 %v139
    %v192 = vunpack.c.l.b16 %v140
    %v193 = vunpack.c.l.b16 %v141
    %v194 = vunpack.c.l.b16 %v142
    %v195 = vpack.c.b16 %v180, %v179
    %v196 = vpack.c.b16 %v182, %v181
    %v197 = vpack.c.b16 %v184, %v183
    %v198 = vpack.c.b16 %v186, %v185
    %v199 = vpack.c.b16 %v188, %v187
    %v200 = vpack.c.b16 %v190, %v189
    %v201 = vpack.c.b16 %v192, %v191
    %v202 = vpack.c.b16 %v194, %v193
    %v227 = vunpack.c.l.b16 %v143
    %v228 = vunpack.c.l.b16 %v144
    %v229 = vunpack.c.l.b16 %v145
    %v230 = vunpack.c.l.b16 %v146
    %v231 = vunpack.c.l.b16 %v147
    %v232 = vunpack.c.l.b16 %v148
    %v233 = vunpack.c.l.b16 %v149
    %v234 = vunpack.c.l.b16 %v150
    %v235 = vunpack.c.l.b16 %v151
    %v236 = vunpack.c.l.b16 %v152
    %v237 = vunpack.c.l.b16 %v153
    %v238 = vunpack.c.l.b16 %v154
    %v239 = vunpack.c.l.b16 %v155
    %v240 = vunpack.c.l.b16 %v156
    %v241 = vunpack.c.l.b16 %v157
    %v242 = vunpack.c.l.b16 %v158
    %v243 = vpack.c.b16 %v228, %v227
    %v244 = vpack.c.b16 %v230, %v229
    %v245 = vpack.c.b16 %v232, %v231
    %v246 = vpack.c.b16 %v234, %v233
    %v247 = vpack.c.b16 %v236, %v235
    %v248 = vpack.c.b16 %v238, %v237
    %v249 = vpack.c.b16 %v240, %v239
    %v250 = vpack.c.b16 %v242, %v241
    %259 = vmatpush.bf16.msra.mxu0 %v250
    %260 = vmatpush.bf16.msra.mxu0 %v249
    %261 = vmatpush.bf16.msra.mxu0 %v248
    %262 = vmatpush.bf16.msra.mxu0 %v247
    %263 = vmatpush.bf16.msra.mxu0 %v246
    %264 = vmatpush.bf16.msra.mxu0 %v245
    %265 = vmatpush.bf16.msra.mxu0 %v244
    %266 = vmatpush.bf16.msra.mxu0 %v243
    %267 = vmatmul.bf16.gmra.mxu0 %v195
    %v268 = vpop.f32.mrf.mxu0
    %v269 = vadd.f32 %v161, %v268
    %v270 = vpop.f32.mrf.mxu0
    %v271 = vadd.f32 %v161, %v270
    %272 = vmatmul.bf16.gmra.mxu0 %v196
    %v273 = vpop.f32.mrf.mxu0
    %v274 = vadd.f32 %v161, %v273
    %v275 = vpop.f32.mrf.mxu0
    %v276 = vadd.f32 %v161, %v275
    %277 = vmatmul.bf16.gmra.mxu0 %v197
    %v278 = vpop.f32.mrf.mxu0
    %v279 = vadd.f32 %v161, %v278
    %v280 = vpop.f32.mrf.mxu0
    %v281 = vadd.f32 %v161, %v280
    %282 = vmatmul.bf16.gmra.mxu0 %v198
    %v283 = vpop.f32.mrf.mxu0
    %v284 = vadd.f32 %v161, %v283
    %v285 = vpop.f32.mrf.mxu0
    %v286 = vadd.f32 %v161, %v285
    %287 = vmatmul.bf16.gmra.mxu0 %v199
    %v288 = vpop.f32.mrf.mxu0
    %v289 = vadd.f32 %v161, %v288
    %v290 = vpop.f32.mrf.mxu0
    %v291 = vadd.f32 %v161, %v290
    %292 = vmatmul.bf16.gmra.mxu0 %v200
    %v293 = vpop.f32.mrf.mxu0
    %v294 = vadd.f32 %v161, %v293
    %v295 = vpop.f32.mrf.mxu0
    %v296 = vadd.f32 %v161, %v295
    %297 = vmatmul.bf16.gmra.mxu0 %v201
    %v298 = vpop.f32.mrf.mxu0
    %v299 = vadd.f32 %v161, %v298
    %v300 = vpop.f32.mrf.mxu0
    %v301 = vadd.f32 %v161, %v300
    %302 = vmatmul.bf16.gmra.mxu0 %v202
    %v303 = vpop.f32.mrf.mxu0
    %v304 = vadd.f32 %v161, %v303
    %v305 = vpop.f32.mrf.mxu0
    %v306 = vadd.f32 %v161, %v305
    %307 = vdwg.mxu0
    %vm308 = vcmp.ge.f32.partialorder %v269, 0.0
    %vm309 = vcmp.ge.f32.partialorder %v271, 0.0
    %vm310 = vcmp.ge.f32.partialorder %v274, 0.0
    %vm311 = vcmp.ge.f32.partialorder %v276, 0.0
    %vm312 = vcmp.ge.f32.partialorder %v279, 0.0
    %vm313 = vcmp.ge.f32.partialorder %v281, 0.0
    %vm314 = vcmp.ge.f32.partialorder %v284, 0.0
    %vm315 = vcmp.ge.f32.partialorder %v286, 0.0
    %vm316 = vcmp.ge.f32.partialorder %v289, 0.0
    %vm317 = vcmp.ge.f32.partialorder %v291, 0.0
    %vm318 = vcmp.ge.f32.partialorder %v294, 0.0
    %vm319 = vcmp.ge.f32.partialorder %v296, 0.0
    %vm320 = vcmp.ge.f32.partialorder %v299, 0.0
    %vm321 = vcmp.ge.f32.partialorder %v301, 0.0
    %vm322 = vcmp.ge.f32.partialorder %v304, 0.0
    %vm323 = vcmp.ge.f32.partialorder %v306, 0.0
    %v324 = vld [vmem:[%s3] sm:$0x1]
    %v326 = vperm.slane %v324, 0
    %v328 = vmul.f32 %v269, %v326
    %v329 = vmul.f32 %v271, %v326
    %v330 = vmul.f32 %v274, %v326
    %v331 = vmul.f32 %v276, %v326
    %v332 = vmul.f32 %v279, %v326
    %v333 = vmul.f32 %v281, %v326
    %v334 = vmul.f32 %v284, %v326
    %v335 = vmul.f32 %v286, %v326
    %v336 = vmul.f32 %v289, %v326
    %v337 = vmul.f32 %v291, %v326
    %v338 = vmul.f32 %v294, %v326
    %v339 = vmul.f32 %v296, %v326
    %v340 = vmul.f32 %v299, %v326
    %v341 = vmul.f32 %v301, %v326
    %v342 = vmul.f32 %v304, %v326
    %v343 = vmul.f32 %v306, %v326
    %v344 = vsel %vm308, %v269, %v328
    %v345 = vsel %vm309, %v271, %v329
    %v346 = vsel %vm310, %v274, %v330
    %v347 = vsel %vm311, %v276, %v331
    %v348 = vsel %vm312, %v279, %v332
    %v349 = vsel %vm313, %v281, %v333
    %v350 = vsel %vm314, %v284, %v334
    %v351 = vsel %vm315, %v286, %v335
    %v352 = vsel %vm316, %v289, %v336
    %v353 = vsel %vm317, %v291, %v337
    %v354 = vsel %vm318, %v294, %v338
    %v355 = vsel %vm319, %v296, %v339
    %v356 = vsel %vm320, %v299, %v340
    %v357 = vsel %vm321, %v301, %v341
    %v358 = vsel %vm322, %v304, %v342
    %v359 = vsel %vm323, %v306, %v343
    %360 = vst [vmem:[#allocation13] sm:$0xff] %v344
    %361 = vst [vmem:[#allocation13 + $0x8] sm:$0xff] %v345
    %362 = vst [vmem:[#allocation13 + $0x10] sm:$0xff] %v346
    %363 = vst [vmem:[#allocation13 + $0x18] sm:$0xff] %v347
    %364 = vst [vmem:[#allocation13 + $0x20] sm:$0xff] %v348
    %365 = vst [vmem:[#allocation13 + $0x28] sm:$0xff] %v349
    %366 = vst [vmem:[#allocation13 + $0x30] sm:$0xff] %v350
    %367 = vst [vmem:[#allocation13 + $0x38] sm:$0xff] %v351
    %368 = vst [vmem:[#allocation13 + $0x40] sm:$0xff] %v352
    %369 = vst [vmem:[#allocation13 + $0x48] sm:$0xff] %v353
    %370 = vst [vmem:[#allocation13 + $0x50] sm:$0xff] %v354
    %371 = vst [vmem:[#allocation13 + $0x58] sm:$0xff] %v355
    %372 = vst [vmem:[#allocation13 + $0x60] sm:$0xff] %v356
    %373 = vst [vmem:[#allocation13 + $0x68] sm:$0xff] %v357
    %374 = vst [vmem:[#allocation13 + $0x70] sm:$0xff] %v358
    %375 = vst [vmem:[#allocation13 + $0x78] sm:$0xff] %v359
    %v376 = vld [vmem:[#allocation7] sm:$0xff]
    %v377 = vld [vmem:[#allocation7 + $0x8] sm:$0xff]
    %v378 = vld [vmem:[#allocation7 + $0x10] sm:$0xff]
    %v379 = vld [vmem:[#allocation7 + $0x18] sm:$0xff]
    %v380 = vld [vmem:[#allocation7 + $0x20] sm:$0xff]
    %v381 = vld [vmem:[#allocation7 + $0x28] sm:$0xff]
    %v382 = vld [vmem:[#allocation7 + $0x30] sm:$0xff]
    %v383 = vld [vmem:[#allocation7 + $0x38] sm:$0xff]
    %v384 = vld [vmem:[#allocation7 + $0x40] sm:$0xff]
    %v385 = vld [vmem:[#allocation7 + $0x48] sm:$0xff]
    %v386 = vld [vmem:[#allocation7 + $0x50] sm:$0xff]
    %v387 = vld [vmem:[#allocation7 + $0x58] sm:$0xff]
    %v388 = vld [vmem:[#allocation7 + $0x60] sm:$0xff]
    %v389 = vld [vmem:[#allocation7 + $0x68] sm:$0xff]
    %v390 = vld [vmem:[#allocation7 + $0x70] sm:$0xff]
    %v391 = vld [vmem:[#allocation7 + $0x78] sm:$0xff]
    %v392 = vld [vmem:[#allocation8] sm:$0xff]
    %v393 = vld [vmem:[#allocation8 + $0x8] sm:$0xff]
    %v394 = vld [vmem:[#allocation8 + $0x10] sm:$0xff]
    %v395 = vld [vmem:[#allocation8 + $0x18] sm:$0xff]
    %v396 = vld [vmem:[#allocation8 + $0x20] sm:$0xff]
    %v397 = vld [vmem:[#allocation8 + $0x28] sm:$0xff]
    %v398 = vld [vmem:[#allocation8 + $0x30] sm:$0xff]
    %v399 = vld [vmem:[#allocation8 + $0x38] sm:$0xff]
    %v400 = vld [vmem:[#allocation8 + $0x40] sm:$0xff]
    %v401 = vld [vmem:[#allocation8 + $0x48] sm:$0xff]
    %v402 = vld [vmem:[#allocation8 + $0x50] sm:$0xff]
    %v403 = vld [vmem:[#allocation8 + $0x58] sm:$0xff]
    %v404 = vld [vmem:[#allocation8 + $0x60] sm:$0xff]
    %v405 = vld [vmem:[#allocation8 + $0x68] sm:$0xff]
    %v406 = vld [vmem:[#allocation8 + $0x70] sm:$0xff]
    %v407 = vld [vmem:[#allocation8 + $0x78] sm:$0xff]
    %v408 = vmax.f32 %v376, %v392
    %v409 = vmax.f32 %v377, %v393
    %v410 = vmax.f32 %v378, %v394
    %v411 = vmax.f32 %v379, %v395
    %v412 = vmax.f32 %v380, %v396
    %v413 = vmax.f32 %v381, %v397
    %v414 = vmax.f32 %v382, %v398
    %v415 = vmax.f32 %v383, %v399
    %v416 = vmax.f32 %v384, %v400
    %v417 = vmax.f32 %v385, %v401
    %v418 = vmax.f32 %v386, %v402
    %v419 = vmax.f32 %v387, %v403
    %v420 = vmax.f32 %v388, %v404
    %v421 = vmax.f32 %v389, %v405
    %v422 = vmax.f32 %v390, %v406
    %v423 = vmax.f32 %v391, %v407
    %v424 = vld [vmem:[#allocation10] sm:$0xff]
    %v425 = vld [vmem:[#allocation10 + $0x8] sm:$0xff]
    %v426 = vld [vmem:[#allocation10 + $0x10] sm:$0xff]
    %v427 = vld [vmem:[#allocation10 + $0x18] sm:$0xff]
    %v428 = vld [vmem:[#allocation10 + $0x20] sm:$0xff]
    %v429 = vld [vmem:[#allocation10 + $0x28] sm:$0xff]
    %v430 = vld [vmem:[#allocation10 + $0x30] sm:$0xff]
    %v431 = vld [vmem:[#allocation10 + $0x38] sm:$0xff]
    %v432 = vld [vmem:[#allocation10 + $0x40] sm:$0xff]
    %v433 = vld [vmem:[#allocation10 + $0x48] sm:$0xff]
    %v434 = vld [vmem:[#allocation10 + $0x50] sm:$0xff]
    %v435 = vld [vmem:[#allocation10 + $0x58] sm:$0xff]
    %v436 = vld [vmem:[#allocation10 + $0x60] sm:$0xff]
    %v437 = vld [vmem:[#allocation10 + $0x68] sm:$0xff]
    %v438 = vld [vmem:[#allocation10 + $0x70] sm:$0xff]
    %v439 = vld [vmem:[#allocation10 + $0x78] sm:$0xff]
    %v440 = vld [vmem:[#allocation11] sm:$0xff]
    %v441 = vld [vmem:[#allocation11 + $0x8] sm:$0xff]
    %v442 = vld [vmem:[#allocation11 + $0x10] sm:$0xff]
    %v443 = vld [vmem:[#allocation11 + $0x18] sm:$0xff]
    %v444 = vld [vmem:[#allocation11 + $0x20] sm:$0xff]
    %v445 = vld [vmem:[#allocation11 + $0x28] sm:$0xff]
    %v446 = vld [vmem:[#allocation11 + $0x30] sm:$0xff]
    %v447 = vld [vmem:[#allocation11 + $0x38] sm:$0xff]
    %v448 = vld [vmem:[#allocation11 + $0x40] sm:$0xff]
    %v449 = vld [vmem:[#allocation11 + $0x48] sm:$0xff]
    %v450 = vld [vmem:[#allocation11 + $0x50] sm:$0xff]
    %v451 = vld [vmem:[#allocation11 + $0x58] sm:$0xff]
    %v452 = vld [vmem:[#allocation11 + $0x60] sm:$0xff]
    %v453 = vld [vmem:[#allocation11 + $0x68] sm:$0xff]
    %v454 = vld [vmem:[#allocation11 + $0x70] sm:$0xff]
    %v455 = vld [vmem:[#allocation11 + $0x78] sm:$0xff]
    %v456 = vmax.f32 %v424, %v440
    %v457 = vmax.f32 %v425, %v441
    %v458 = vmax.f32 %v426, %v442
    %v459 = vmax.f32 %v427, %v443
    %v460 = vmax.f32 %v428, %v444
    %v461 = vmax.f32 %v429, %v445
    %v462 = vmax.f32 %v430, %v446
    %v463 = vmax.f32 %v431, %v447
    %v464 = vmax.f32 %v432, %v448
    %v465 = vmax.f32 %v433, %v449
    %v466 = vmax.f32 %v434, %v450
    %v467 = vmax.f32 %v435, %v451
    %v468 = vmax.f32 %v436, %v452
    %v469 = vmax.f32 %v437, %v453
    %v470 = vmax.f32 %v438, %v454
    %v471 = vmax.f32 %v439, %v455
    %v472 = vmax.f32 %v408, %v456
    %v473 = vmax.f32 %v409, %v457
    %v474 = vmax.f32 %v410, %v458
    %v475 = vmax.f32 %v411, %v459
    %v476 = vmax.f32 %v412, %v460
    %v477 = vmax.f32 %v413, %v461
    %v478 = vmax.f32 %v414, %v462
    %v479 = vmax.f32 %v415, %v463
    %v480 = vmax.f32 %v416, %v464
    %v481 = vmax.f32 %v417, %v465
    %v482 = vmax.f32 %v418, %v466
    %v483 = vmax.f32 %v419, %v467
    %v484 = vmax.f32 %v420, %v468
    %v485 = vmax.f32 %v421, %v469
    %v486 = vmax.f32 %v422, %v470
    %v487 = vmax.f32 %v423, %v471
    %488 = vst [vmem:[#allocation14] sm:$0xff] %v472
    %489 = vst [vmem:[#allocation14 + $0x8] sm:$0xff] %v473
    %490 = vst [vmem:[#allocation14 + $0x10] sm:$0xff] %v474
    %491 = vst [vmem:[#allocation14 + $0x18] sm:$0xff] %v475
    %492 = vst [vmem:[#allocation14 + $0x20] sm:$0xff] %v476
    %493 = vst [vmem:[#allocation14 + $0x28] sm:$0xff] %v477
    %494 = vst [vmem:[#allocation14 + $0x30] sm:$0xff] %v478
    %495 = vst [vmem:[#allocation14 + $0x38] sm:$0xff] %v479
    %496 = vst [vmem:[#allocation14 + $0x40] sm:$0xff] %v480
    %497 = vst [vmem:[#allocation14 + $0x48] sm:$0xff] %v481
    %498 = vst [vmem:[#allocation14 + $0x50] sm:$0xff] %v482
    %499 = vst [vmem:[#allocation14 + $0x58] sm:$0xff] %v483
    %500 = vst [vmem:[#allocation14 + $0x60] sm:$0xff] %v484
    %501 = vst [vmem:[#allocation14 + $0x68] sm:$0xff] %v485
    %502 = vst [vmem:[#allocation14 + $0x70] sm:$0xff] %v486
    %503 = vst [vmem:[#allocation14 + $0x78] sm:$0xff] %v487
    // Predicated region
    $region58: #{tpu_custom_call.1} parent=1 // pred_check
      _
    $region59: #{tpu_custom_call.1} parent=1 // pred_check_branch
      %505 = sbr.rel (0) target = $region61
    $region60: #{tpu_custom_call.1} parent=1 // pred_region
      %507 = vsyncadd [#allocation4], 0
      %s508 = sshll.u32 [#allocation13], 4
      %s509 = int_to_ptr.vmem [resolvable:$true] %s508
      %s510 = sshll.u32 %s8, 4
      %s511 = int_to_ptr.hbm [resolvable:$true] %s510
      %516 = dma.vmem_to_hbm [thread:$0]  %s509, 2048, %s511, [#allocation4], 128, 128, 8
    $region61: #{tpu_custom_call.1} parent=1 // pred_fallthru
      _
    // Predicated region
    $region62: #{tpu_custom_call.1} parent=1 // pred_check
      _
    $region63: #{tpu_custom_call.1} parent=1 // pred_check_branch
      %518 = sbr.rel (0) target = $region65
    $region64: #{tpu_custom_call.1} parent=1 // pred_region
      %520 = vsyncadd [#allocation15], 0
      %s521 = sshll.u32 [#allocation14], 4
      %s522 = int_to_ptr.vmem [resolvable:$true] %s521
      %s523 = sshll.u32 %s9, 4
      %s524 = int_to_ptr.hbm [resolvable:$true] %s523
      %529 = dma.vmem_to_hbm [thread:$0]  %s522, 2048, %s524, [#allocation15], 128, 128, 8
    $region65: #{tpu_custom_call.1} parent=1 // pred_fallthru
      _
    // Predicated region
    $region66: #{tpu_custom_call.1} parent=1 // pred_check
      _
    $region67: #{tpu_custom_call.1} parent=1 // pred_check_branch
      %531 = sbr.rel (0) target = $region69
    $region68: #{tpu_custom_call.1} parent=1 // pred_region
      %533 = dma.done [#allocation4], 2048
    $region69: #{tpu_custom_call.1} parent=1 // pred_fallthru
      _
    // Predicated region
    $region70: #{tpu_custom_call.1} parent=1 // pred_check
      _
    $region71: #{tpu_custom_call.1} parent=1 // pred_check_branch
      %535 = sbr.rel (0) target = $region73
    $region72: #{tpu_custom_call.1} parent=1 // pred_region
      %537 = dma.done [#allocation15], 2048
    $region73: #{tpu_custom_call.1} parent=1 // pred_fallthru
      _
    %538 = vsyncpa [#allocation3], 1
    %539 = vsyncpa [#allocation6], 1
    %540 = vsyncpa [#allocation9], 1
    %541 = vsyncpa [#allocation12], 1
    %542 = vsyncpa [#allocation4], 1
    %543 = vsyncpa [#allocation15], 1

</llo_original>
